<compile_context>
chip_gen: v6e
topology: v6e:2x2x1
jax: 0.10.0
libtpu: 0.0.40
codegen_flags: <defaults>
</compile_context>

<pallas_src>
import functools

import jax
import jax.numpy as jnp
from jax.experimental import pallas as pl
from jax.experimental.pallas import tpu as pltpu


# ----------------------------- fused Pallas kernel ---------------------------
def _hypernet_kernel(t_ref, w1_ref, b1_ref, w2t_ref, b2_ref, w3t_ref, b3_ref,
                     w_out_ref, u_out_ref, b_out_ref, *, blocksize):
    # ---- HyperNetwork MLP --------------------------------------------------
    t = t_ref[0]                                                # f32 scalar (SMEM)
    # fc1: Linear(1, hidden)  ->  t * w1_row + b1_row
    h1 = jnp.tanh(t * w1_ref[...] + b1_ref[...])                # (1, hidden)
    # fc2: Linear(hidden, hidden)
    h2 = jnp.tanh(
        jnp.dot(h1, w2t_ref[...], preferred_element_type=jnp.float32)
        + b2_ref[...])                                          # (1, hidden)
    # fc3: Linear(hidden, 3*blocksize + width)
    p = (jnp.dot(h2, w3t_ref[...], preferred_element_type=jnp.float32)
         + b3_ref[...])                                         # (1, 3*bs + width)

    # ---- split + gate  (flat, lane-dense; reshape to module layout outside) -
    w_flat = p[:, :blocksize]                                   # (1, blocksize)
    u_flat = p[:, blocksize:2 * blocksize]                      # (1, blocksize)
    g_flat = p[:, 2 * blocksize:3 * blocksize]                  # (1, blocksize)
    b_flat = p[:, 3 * blocksize:]                               # (1, width)

    u_gated = u_flat * (1.0 / (1.0 + jnp.exp(-g_flat)))         # U * sigmoid(G)

    w_out_ref[...] = w_flat
    u_out_ref[...] = u_gated
    b_out_ref[...] = b_flat


# ------------------------------- wrappers -------------------------------------
def prepare_hypernet_params(params):
    """One-time re-layout of the HyperNetwork weights for the fused kernel."""
    hidden = params["w1"].shape[0]
    return (
        params["w1"].reshape(1, hidden).astype(jnp.float32),   # fc1 weight as a row
        params["b1"].reshape(1, hidden).astype(jnp.float32),   # fc1 bias   as a row
        params["w2"].T.astype(jnp.float32),                    # fc2 weight, pre-transposed
        params["b2"].reshape(1, hidden).astype(jnp.float32),   # fc2 bias   as a row
        params["w3"].T.astype(jnp.float32),                    # fc3 weight, pre-transposed
        params["b3"].reshape(1, -1).astype(jnp.float32),       # fc3 bias   as a row
    )


def hypernetwork_pallas(t, prep, *, in_out_dim=2, hidden_dim=32, width=64):
    """HyperNetwork.forward(t) -> [W, B, U] with the module's shapes."""
    blocksize = in_out_dim * width
    out_dim = 3 * blocksize + width
    t_arr = jnp.asarray(t, jnp.float32).reshape(1)

    kernel = functools.partial(_hypernet_kernel, blocksize=blocksize)

    vmem = pl.BlockSpec(memory_space=pltpu.MemorySpace.VMEM)
    smem = pl.BlockSpec(memory_space=pltpu.MemorySpace.SMEM)

    w_flat, u_flat, b_flat = pl.pallas_call(
        kernel,
        out_shape=(
            jax.ShapeDtypeStruct((1, blocksize), jnp.float32),   # W (flat)
            jax.ShapeDtypeStruct((1, blocksize), jnp.float32),   # U*sigmoid(G) (flat)
            jax.ShapeDtypeStruct((1, width), jnp.float32),       # B (flat)
        ),
        in_specs=[
            smem,    # t (scalar)
            vmem,    # fc1 weight row      (1, hidden)
            vmem,    # fc1 bias row        (1, hidden)
            vmem,    # fc2 weight^T        (hidden, hidden)
            vmem,    # fc2 bias row        (1, hidden)
            vmem,    # fc3 weight^T        (hidden, out_dim)
            vmem,    # fc3 bias row        (1, out_dim)
        ],
        out_specs=(vmem, vmem, vmem),
    )(t_arr, *prep)

    del out_dim
    # Module-natural shapes (cheap XLA reshapes outside the kernel).
    W = w_flat.reshape(width, in_out_dim, 1)
    U = u_flat.reshape(width, 1, in_out_dim)
    B = b_flat.reshape(width, 1, 1)
    return W, B, U


# ------------------------------ pure-JAX reference ----------------------------
def init_hypernetwork_params(key, in_out_dim=2, hidden_dim=32, width=64):
    blocksize = in_out_dim * width
    out_dim = 3 * blocksize + width
    k1, k2, k3, k4, k5, k6 = jax.random.split(key, 6)
    scale = 0.1
    return {
        "w1": scale * jax.random.normal(k1, (hidden_dim, 1), jnp.float32),
        "b1": scale * jax.random.normal(k2, (hidden_dim,), jnp.float32),
        "w2": scale * jax.random.normal(k3, (hidden_dim, hidden_dim), jnp.float32),
        "b2": scale * jax.random.normal(k4, (hidden_dim,), jnp.float32),
        "w3": scale * jax.random.normal(k5, (out_dim, hidden_dim), jnp.float32),
        "b3": scale * jax.random.normal(k6, (out_dim,), jnp.float32),
    }


def hypernetwork_reference(params, t, in_out_dim=2, width=64):
    """Pure-JAX mirror of the PyTorch HyperNetwork.forward."""
    blocksize = in_out_dim * width
    p = jnp.reshape(jnp.asarray(t, jnp.float32), (1, 1))
    p = jnp.tanh(p @ params["w1"].T + params["b1"])
    p = jnp.tanh(p @ params["w2"].T + params["b2"])
    p = (p @ params["w3"].T + params["b3"]).reshape(-1)
    W = p[:blocksize].reshape(width, in_out_dim, 1)
    U = p[blocksize:2 * blocksize].reshape(width, 1, in_out_dim)
    G = p[2 * blocksize:3 * blocksize].reshape(width, 1, in_out_dim)
    U = U * jax.nn.sigmoid(G)
    B = p[3 * blocksize:].reshape(width, 1, 1)
    return W, B, U


# ----------------------------------- main --------------------------------------
if __name__ == "__main__":
    in_out_dim, hidden_dim, width = 2, 32, 64

    key = jax.random.PRNGKey(0)
    params = init_hypernetwork_params(key, in_out_dim, hidden_dim, width)
    prep = prepare_hypernet_params(params)

    fwd = jax.jit(functools.partial(hypernetwork_pallas, in_out_dim=in_out_dim,
                                    hidden_dim=hidden_dim, width=width))

    t = jnp.float32(0.5)
    W, B, U = fwd(t, prep)
    jax.block_until_ready((W, B, U))

    W_ref, B_ref, U_ref = hypernetwork_reference(params, t, in_out_dim, width)

    assert W.shape == (width, in_out_dim, 1)
    assert B.shape == (width, 1, 1)
    assert U.shape == (width, 1, in_out_dim)
    assert jnp.allclose(W, W_ref, atol=1e-5, rtol=1e-4)
    assert jnp.allclose(B, B_ref, atol=1e-5, rtol=1e-4)
    assert jnp.allclose(U, U_ref, atol=1e-5, rtol=1e-4)

    # Second time value to exercise the t-dependence of the hypernetwork.
    t2 = jnp.float32(-1.25)
    W2, B2, U2 = fwd(t2, prep)
    jax.block_until_ready((W2, B2, U2))
    W2_ref, B2_ref, U2_ref = hypernetwork_reference(params, t2, in_out_dim, width)
    assert jnp.allclose(W2, W2_ref, atol=1e-5, rtol=1e-4)
    assert jnp.allclose(B2, B2_ref, atol=1e-5, rtol=1e-4)
    assert jnp.allclose(U2, U2_ref, atol=1e-5, rtol=1e-4)

    print("KERNEL_OK")
</pallas_src>

<mosaic_0001>
module attributes {stable_mosaic.version = 11 : i64} {
  func.func @_hypernet_kernel(%arg0: memref<1xf32, #tpu.memory_space<smem>>, %arg1: memref<1x32xf32, #tpu.memory_space<vmem>>, %arg2: memref<1x32xf32, #tpu.memory_space<vmem>>, %arg3: memref<32x32xf32, #tpu.memory_space<vmem>>, %arg4: memref<1x32xf32, #tpu.memory_space<vmem>>, %arg5: memref<32x448xf32, #tpu.memory_space<vmem>>, %arg6: memref<1x448xf32, #tpu.memory_space<vmem>>, %arg7: memref<1x128xf32, #tpu.memory_space<vmem>>, %arg8: memref<1x128xf32, #tpu.memory_space<vmem>>, %arg9: memref<1x64xf32, #tpu.memory_space<vmem>>) attributes {dimension_semantics = [], scalar_prefetch = 0 : i64, scratch_operands = 0 : i64, tpu.core_type = #tpu.core_type<tc>} {
    %c0 = arith.constant 0 : index
    %0 = memref.load %arg0[%c0] : memref<1xf32, #tpu.memory_space<smem>>
    %c0_0 = arith.constant 0 : index
    %c0_1 = arith.constant 0 : index
    %1 = vector.load %arg1[%c0_0, %c0_1] : memref<1x32xf32, #tpu.memory_space<vmem>>, vector<1x32xf32>
    %2 = vector.broadcast %0 : f32 to vector<1x32xf32>
    %3 = arith.mulf %2, %1 : vector<1x32xf32>
    %c0_2 = arith.constant 0 : index
    %c0_3 = arith.constant 0 : index
    %4 = vector.load %arg2[%c0_2, %c0_3] : memref<1x32xf32, #tpu.memory_space<vmem>>, vector<1x32xf32>
    %5 = arith.addf %3, %4 : vector<1x32xf32>
    %6 = math.tanh %5 : vector<1x32xf32>
    %c0_4 = arith.constant 0 : index
    %c0_5 = arith.constant 0 : index
    %7 = vector.load %arg3[%c0_4, %c0_5] : memref<32x32xf32, #tpu.memory_space<vmem>>, vector<32x32xf32>
    %cst = arith.constant dense<0.000000e+00> : vector<1x32xf32>
    %8 = tpu.matmul %6, %7, %cst {dimension_numbers = #tpu.dot_dimension_numbers<[1], [0], [0], [1], [0, 0, 1, 1], [], []>} : vector<1x32xf32>, vector<32x32xf32>, vector<1x32xf32> -> vector<1x32xf32>
    %c0_6 = arith.constant 0 : index
    %c0_7 = arith.constant 0 : index
    %9 = vector.load %arg4[%c0_6, %c0_7] : memref<1x32xf32, #tpu.memory_space<vmem>>, vector<1x32xf32>
    %10 = arith.addf %8, %9 : vector<1x32xf32>
    %11 = math.tanh %10 : vector<1x32xf32>
    %c0_8 = arith.constant 0 : index
    %c0_9 = arith.constant 0 : index
    %12 = vector.load %arg5[%c0_8, %c0_9] : memref<32x448xf32, #tpu.memory_space<vmem>>, vector<32x448xf32>
    %cst_10 = arith.constant dense<0.000000e+00> : vector<1x448xf32>
    %13 = tpu.matmul %11, %12, %cst_10 {dimension_numbers = #tpu.dot_dimension_numbers<[1], [0], [0], [1], [0, 0, 1, 1], [], []>} : vector<1x32xf32>, vector<32x448xf32>, vector<1x448xf32> -> vector<1x448xf32>
    %c0_11 = arith.constant 0 : index
    %c0_12 = arith.constant 0 : index
    %14 = vector.load %arg6[%c0_11, %c0_12] : memref<1x448xf32, #tpu.memory_space<vmem>>, vector<1x448xf32>
    %15 = arith.addf %13, %14 : vector<1x448xf32>
    %16 = vector.extract_strided_slice %15 {offsets = [0, 0], sizes = [1, 128], strides = [1, 1]} : vector<1x448xf32> to vector<1x128xf32>
    %17 = vector.extract_strided_slice %15 {offsets = [0, 128], sizes = [1, 128], strides = [1, 1]} : vector<1x448xf32> to vector<1x128xf32>
    %18 = vector.extract_strided_slice %15 {offsets = [0, 256], sizes = [1, 128], strides = [1, 1]} : vector<1x448xf32> to vector<1x128xf32>
    %19 = vector.extract_strided_slice %15 {offsets = [0, 384], sizes = [1, 64], strides = [1, 1]} : vector<1x448xf32> to vector<1x64xf32>
    %cst_13 = arith.constant 0.000000e+00 : f32
    %20 = vector.broadcast %cst_13 : f32 to vector<1x128xf32>
    %21 = arith.subf %20, %18 : vector<1x128xf32>
    %22 = math.exp %21 : vector<1x128xf32>
    %cst_14 = arith.constant 1.000000e+00 : f32
    %23 = vector.broadcast %cst_14 : f32 to vector<1x128xf32>
    %24 = arith.addf %23, %22 : vector<1x128xf32>
    %cst_15 = arith.constant 1.000000e+00 : f32
    %25 = vector.broadcast %cst_15 : f32 to vector<1x128xf32>
    %26 = arith.divf %25, %24 : vector<1x128xf32>
    %27 = arith.mulf %17, %26 : vector<1x128xf32>
    %c0_16 = arith.constant 0 : index
    %c0_17 = arith.constant 0 : index
    %28 = vector.load %arg7[%c0_16, %c0_17] : memref<1x128xf32, #tpu.memory_space<vmem>>, vector<1x128xf32>
    tpu.vector_store %arg7[%c0_16, %c0_17], %16 {strides = array<i32>} : memref<1x128xf32, #tpu.memory_space<vmem>>, vector<1x128xf32>,
    %c0_18 = arith.constant 0 : index
    %c0_19 = arith.constant 0 : index
    %29 = vector.load %arg8[%c0_18, %c0_19] : memref<1x128xf32, #tpu.memory_space<vmem>>, vector<1x128xf32>
    tpu.vector_store %arg8[%c0_18, %c0_19], %27 {strides = array<i32>} : memref<1x128xf32, #tpu.memory_space<vmem>>, vector<1x128xf32>,
    %c0_20 = arith.constant 0 : index
    %c0_21 = arith.constant 0 : index
    %30 = vector.load %arg9[%c0_20, %c0_21] : memref<1x64xf32, #tpu.memory_space<vmem>>, vector<1x64xf32>
    tpu.vector_store %arg9[%c0_20, %c0_21], %19 {strides = array<i32>} : memref<1x64xf32, #tpu.memory_space<vmem>>, vector<1x64xf32>,
    return
  }
}

</mosaic_0001>

<llo_original>
// kernel: hypernetwork_pallas.1
$region0: #{hypernetwork_pallas.1}
  #allocation0 [shape = 'u32[]', space=smem, size = 0x4, offset = 0x4, fixed_abs, tag = 'smem constant byte address 0x4 - core index']
  #allocation1 [shape = 'u32[144,128]{1,0:T(1,128)}', space=vmem, size = 0x12000, scoped, tag = 'internal scratch']
  #allocation2 [shape = 'f32[1]{0:T(128)S(6)}', space=smem, size = 0x200, scoped, tag = 'scoped memory for hypernetwork_pallas.1']
  %s0 = inlined_call_operand.<no memory space> [shape: f32[1], index: 0, kind: input, shape index: {}]
  %s1 = inlined_call_operand.vmem [shape: f32[1,32], index: 1, kind: input, shape index: {}]
  %s2 = inlined_call_operand.vmem [shape: f32[1,32], index: 2, kind: input, shape index: {}]
  %s3 = inlined_call_operand.hbm [shape: f32[32,32], index: 3, kind: input, shape index: {}]
  %s4 = inlined_call_operand.vmem [shape: f32[1,32], index: 4, kind: input, shape index: {}]
  %s5 = inlined_call_operand.hbm [shape: f32[32,448], index: 5, kind: input, shape index: {}]
  %s6 = inlined_call_operand.vmem [shape: f32[1,448], index: 6, kind: input, shape index: {}]
  %s7 = inlined_call_operand.vmem [shape: f32[1,128], index: 7, kind: output, shape index: {0}]
  %s8 = inlined_call_operand.vmem [shape: f32[1,128], index: 8, kind: output, shape index: {1}]
  %s9 = inlined_call_operand.hbm [shape: f32[1,64], index: 9, kind: output, shape index: {2}]
  %10 = xla_tuple %s7, %s8, %s9
  %s11 = sld [smem:[#allocation0]]
  $region62: #{hypernetwork_pallas.1} parent=0
    _
  %s13 = ssub.s32 1, %s11
  %s14 = scalar_select 0, %s13, %s11
  %15 = sst [smem:[#allocation2]] %s0
  $region1: #{hypernetwork_pallas.1} parent=0
    #allocation3 [shape = 'u8[16384]{0}', space=vmem, size = 0x4000, scoped, tag = 'input window, operand 3, single buffered']
    #allocation4 [shape = 's32[1]{0}', space=sflag, size = 0x4, scoped, tag = 'scoped memory for hypernetwork_pallas.1']
    #allocation5 [shape = 's32[1]{0}', space=sflag, size = 0x4, scoped, tag = 'scoped memory for hypernetwork_pallas.1']
    #allocation6 [shape = 'u8[65536]{0}', space=vmem, size = 0x10000, scoped, tag = 'input window, operand 5, single buffered']
    #allocation7 [shape = 's32[1]{0}', space=sflag, size = 0x4, scoped, tag = 'scoped memory for hypernetwork_pallas.1']
    #allocation8 [shape = 'u8[512]{0}', space=vmem, size = 0x400, scoped, tag = 'output window, operand 2, single buffered']
    %16 = vsyncpa [#allocation4], 0
    %17 = vsyncpa [#allocation7], 0
    %18 = vsyncpa [#allocation5], 0
    // Predicated region
    $region2: #{hypernetwork_pallas.1} parent=1 // pred_check
      _
    $region3: #{hypernetwork_pallas.1} parent=1 // pred_check_branch
      %20 = sbr.rel (0) target = $region5
    $region4: #{hypernetwork_pallas.1} parent=1 // pred_region
      _
    $region5: #{hypernetwork_pallas.1} parent=1 // pred_fallthru
      _
    // Predicated region
    $region6: #{hypernetwork_pallas.1} parent=1 // pred_check
      _
    $region7: #{hypernetwork_pallas.1} parent=1 // pred_check_branch
      %22 = sbr.rel (0) target = $region9
    $region8: #{hypernetwork_pallas.1} parent=1 // pred_region
      _
    $region9: #{hypernetwork_pallas.1} parent=1 // pred_fallthru
      _
    // Predicated region
    $region10: #{hypernetwork_pallas.1} parent=1 // pred_check
      _
    $region11: #{hypernetwork_pallas.1} parent=1 // pred_check_branch
      %24 = sbr.rel (0) target = $region13
    $region12: #{hypernetwork_pallas.1} parent=1 // pred_region
      _
    $region13: #{hypernetwork_pallas.1} parent=1 // pred_fallthru
      _
    // Predicated region
    $region14: #{hypernetwork_pallas.1} parent=1 // pred_check
      _
    $region15: #{hypernetwork_pallas.1} parent=1 // pred_check_branch
      %26 = sbr.rel (0) target = $region17
    $region16: #{hypernetwork_pallas.1} parent=1 // pred_region
      %s28 = ssub.s32 512, 512
      %29 = vsyncadd [#allocation4], %s28
      %s30 = sshll.u32 [#allocation3], 4
      %s31 = int_to_ptr.vmem [resolvable:$true] %s30
      %36 = dma.hbm_to_vmem [thread:$0]  %s3, 512, %s31, [#allocation4], 128, 128, 8
    $region17: #{hypernetwork_pallas.1} parent=1 // pred_fallthru
      _
    // Predicated region
    $region18: #{hypernetwork_pallas.1} parent=1 // pred_check
      _
    $region19: #{hypernetwork_pallas.1} parent=1 // pred_check_branch
      %38 = sbr.rel (0) target = $region21
    $region20: #{hypernetwork_pallas.1} parent=1 // pred_region
      _
    $region21: #{hypernetwork_pallas.1} parent=1 // pred_fallthru
      _
    // Predicated region
    $region22: #{hypernetwork_pallas.1} parent=1 // pred_check
      _
    $region23: #{hypernetwork_pallas.1} parent=1 // pred_check_branch
      %40 = sbr.rel (0) target = $region25
    $region24: #{hypernetwork_pallas.1} parent=1 // pred_region
      %s42 = ssub.s32 2048, 2048
      %43 = vsyncadd [#allocation7], %s42
      %s44 = sshll.u32 [#allocation6], 4
      %s45 = int_to_ptr.vmem [resolvable:$true] %s44
      %50 = dma.hbm_to_vmem [thread:$0]  %s5, 2048, %s45, [#allocation7], 512, 512, 32
    $region25: #{hypernetwork_pallas.1} parent=1 // pred_fallthru
      _
    // Predicated region
    $region26: #{hypernetwork_pallas.1} parent=1 // pred_check
      _
    $region27: #{hypernetwork_pallas.1} parent=1 // pred_check_branch
      %52 = sbr.rel (0) target = $region29
    $region28: #{hypernetwork_pallas.1} parent=1 // pred_region
      _
    $region29: #{hypernetwork_pallas.1} parent=1 // pred_fallthru
      _
    // Predicated region
    $region30: #{hypernetwork_pallas.1} parent=1 // pred_check
      _
    $region31: #{hypernetwork_pallas.1} parent=1 // pred_check_branch
      %54 = sbr.rel (0) target = $region33
    $region32: #{hypernetwork_pallas.1} parent=1 // pred_region
      %55 = dma.done [#allocation4], 512
    $region33: #{hypernetwork_pallas.1} parent=1 // pred_fallthru
      _
    // Predicated region
    $region34: #{hypernetwork_pallas.1} parent=1 // pred_check
      _
    $region35: #{hypernetwork_pallas.1} parent=1 // pred_check_branch
      %57 = sbr.rel (0) target = $region37
    $region36: #{hypernetwork_pallas.1} parent=1 // pred_region
      %58 = dma.done [#allocation7], 2048
    $region37: #{hypernetwork_pallas.1} parent=1 // pred_fallthru
      _
    %s59 = sld [smem:[#allocation2]]
    %v60 = vld [vmem:[%s1] sm:$0x1]
    %v61 = vstv %s59
    %v62 = vmul.f32 %v61, %v60
    %v63 = vld [vmem:[%s2] sm:$0x1]
    %v64 = vadd.f32 %v62, %v63
    %v65 = vtanh.pop %v64
    %v66 = vld [vmem:[#allocation3] sm:$0xff]
    %v67 = vld [vmem:[#allocation3 + $0x8] sm:$0xff]
    %v68 = vld [vmem:[#allocation3 + $0x10] sm:$0xff]
    %v69 = vld [vmem:[#allocation3 + $0x18] sm:$0xff]
    %v70 = vld [vmem:[%s4] sm:$0x1]
    %vm71 = vcmask 261120
    %v73 = vsel %vm71, %v65, 0
    %75 = vmatprep.subr.mxu0 0.0
    %76 = vmatpush1.msra.mxu0 0.0
    %77 = vmatprep.subr.mxu0 0.0
    %78 = vmatpush1.msra.mxu0 0.0
    %79 = vmatprep.subr.mxu0 0.0
    %80 = vmatpush1.msra.mxu0 0.0
    %81 = vmatprep.subr.mxu0 0.0
    %82 = vmatpush1.msra.mxu0 0.0
    %83 = vmatprep.subr.mxu0 0.0
    %84 = vmatpush1.msra.mxu0 0.0
    %85 = vmatprep.subr.mxu0 0.0
    %86 = vmatpush1.msra.mxu0 0.0
    %87 = vmatprep.subr.mxu0 0.0
    %88 = vmatpush1.msra.mxu0 0.0
    %89 = vmatprep.subr.mxu0 0.0
    %90 = vmatpush1.msra.mxu0 0.0
    %91 = vmatprep.subr.mxu0 0.0
    %92 = vmatpush1.msra.mxu0 0.0
    %93 = vmatprep.subr.mxu0 0.0
    %94 = vmatpush1.msra.mxu0 0.0
    %95 = vmatprep.subr.mxu0 0.0
    %96 = vmatpush1.msra.mxu0 0.0
    %97 = vmatprep.subr.mxu0 0.0
    %98 = vmatpush1.msra.mxu0 0.0
    %99 = vmatprep.subr.mxu0 0.0
    %100 = vmatpush1.msra.mxu0 %v69
    %101 = vmatprep.subr.mxu0 0.0
    %102 = vmatpush1.msra.mxu0 %v68
    %103 = vmatprep.subr.mxu0 0.0
    %104 = vmatpush1.msra.mxu0 %v67
    %105 = vmatprep.subr.mxu0 0.0
    %106 = vmatpush1.msra.mxu0 %v66
    %107 = vmatprep.subr.mxu0 0.0
    %108 = vmatpush2.msra.mxu0 0.0
    %109 = vmatprep.subr.mxu0 0.0
    %110 = vmatpush2.msra.mxu0 0.0
    %111 = vmatprep.subr.mxu0 0.0
    %112 = vmatpush2.msra.mxu0 0.0
    %113 = vmatprep.subr.mxu0 0.0
    %114 = vmatpush2.msra.mxu0 0.0
    %115 = vmatprep.subr.mxu0 0.0
    %116 = vmatpush2.msra.mxu0 0.0
    %117 = vmatprep.subr.mxu0 0.0
    %118 = vmatpush2.msra.mxu0 0.0
    %119 = vmatprep.subr.mxu0 0.0
    %120 = vmatpush2.msra.mxu0 0.0
    %121 = vmatprep.subr.mxu0 0.0
    %122 = vmatpush2.msra.mxu0 0.0
    %123 = vmatprep.subr.mxu0 0.0
    %124 = vmatpush2.msra.mxu0 0.0
    %125 = vmatprep.subr.mxu0 0.0
    %126 = vmatpush2.msra.mxu0 0.0
    %127 = vmatprep.subr.mxu0 0.0
    %128 = vmatpush2.msra.mxu0 0.0
    %129 = vmatprep.subr.mxu0 0.0
    %130 = vmatpush2.msra.mxu0 0.0
    %131 = vmatprep.subr.mxu0 0.0
    %132 = vmatpush2.msra.mxu0 0.0
    %133 = vmatprep.subr.mxu0 0.0
    %134 = vmatpush2.msra.mxu0 0.0
    %135 = vmatprep.subr.mxu0 0.0
    %136 = vmatpush2.msra.mxu0 0.0
    %137 = vmatprep.subr.mxu0 0.0
    %138 = vmatpush2.msra.mxu0 0.0
    %139 = vmatprep.mubr.f32.mxu0 0.0
    %140 = vmatmul.mubr.f32.gmra.mxu0 %v73
    %v141 = vpop.f32.mrf.mxu0
    %v142 = vadd.f32 %v70, %v141
    %v143 = vpop.f32.mrf.mxu0
    %144 = vdwg.mxu0
    %v145 = vtanh.pop %v142
    %v146 = vld [vmem:[#allocation6] sm:$0xff]
    %v147 = vld [vmem:[#allocation6 + $0x8] sm:$0xff]
    %v148 = vld [vmem:[#allocation6 + $0x10] sm:$0xff]
    %v149 = vld [vmem:[#allocation6 + $0x18] sm:$0xff]
    %v150 = vld [vmem:[#allocation6 + $0x20] sm:$0xff]
    %v151 = vld [vmem:[#allocation6 + $0x28] sm:$0xff]
    %v152 = vld [vmem:[#allocation6 + $0x30] sm:$0xff]
    %v153 = vld [vmem:[#allocation6 + $0x38] sm:$0xff]
    %v154 = vld [vmem:[#allocation6 + $0x40] sm:$0xff]
    %v155 = vld [vmem:[#allocation6 + $0x48] sm:$0xff]
    %v156 = vld [vmem:[#allocation6 + $0x50] sm:$0xff]
    %v157 = vld [vmem:[#allocation6 + $0x58] sm:$0xff]
    %v158 = vld [vmem:[#allocation6 + $0x60] sm:$0xff]
    %v159 = vld [vmem:[#allocation6 + $0x68] sm:$0xff]
    %v160 = vld [vmem:[#allocation6 + $0x70] sm:$0xff]
    %v161 = vld [vmem:[#allocation6 + $0x78] sm:$0xff]
    %v162 = vld [vmem:[%s6] sm:$0xf]
    %v164 = vlaneseq
    %v165 = vshrl.u32 %v164, 7
    %v166 = vsub.s32 0, %v165
    %v167 = vrot.slane %v162, %v166
    %v168 = vlaneseq
    %v169 = vshrl.u32 %v168, 7
    %v170 = vsub.s32 1, %v169
    %v171 = vrot.slane %v162, %v170
    %v172 = vlaneseq
    %v173 = vshrl.u32 %v172, 7
    %v174 = vsub.s32 2, %v173
    %v175 = vrot.slane %v162, %v174
    %v176 = vlaneseq
    %v177 = vshrl.u32 %v176, 7
    %v178 = vsub.s32 3, %v177
    %v179 = vrot.slane %v162, %v178
    %v185 = vsel %vm71, %v145, 0
    %187 = vmatprep.subr.mxu0 0.0
    %188 = vmatpush1.msra.mxu0 0.0
    %189 = vmatprep.subr.mxu0 0.0
    %190 = vmatpush1.msra.mxu0 0.0
    %191 = vmatprep.subr.mxu0 0.0
    %192 = vmatpush1.msra.mxu0 0.0
    %193 = vmatprep.subr.mxu0 0.0
    %194 = vmatpush1.msra.mxu0 0.0
    %195 = vmatprep.subr.mxu0 0.0
    %196 = vmatpush1.msra.mxu0 0.0
    %197 = vmatprep.subr.mxu0 0.0
    %198 = vmatpush1.msra.mxu0 0.0
    %199 = vmatprep.subr.mxu0 0.0
    %200 = vmatpush1.msra.mxu0 0.0
    %201 = vmatprep.subr.mxu0 0.0
    %202 = vmatpush1.msra.mxu0 0.0
    %203 = vmatprep.subr.mxu0 0.0
    %204 = vmatpush1.msra.mxu0 0.0
    %205 = vmatprep.subr.mxu0 0.0
    %206 = vmatpush1.msra.mxu0 0.0
    %207 = vmatprep.subr.mxu0 0.0
    %208 = vmatpush1.msra.mxu0 0.0
    %209 = vmatprep.subr.mxu0 0.0
    %210 = vmatpush1.msra.mxu0 0.0
    %211 = vmatprep.subr.mxu0 %v159
    %212 = vmatpush1.msra.mxu0 %v158
    %213 = vmatprep.subr.mxu0 %v155
    %214 = vmatpush1.msra.mxu0 %v154
    %215 = vmatprep.subr.mxu0 %v151
    %216 = vmatpush1.msra.mxu0 %v150
    %217 = vmatprep.subr.mxu0 %v147
    %218 = vmatpush1.msra.mxu0 %v146
    %219 = vmatprep.subr.mxu0 0.0
    %220 = vmatpush2.msra.mxu0 0.0
    %221 = vmatprep.subr.mxu0 0.0
    %222 = vmatpush2.msra.mxu0 0.0
    %223 = vmatprep.subr.mxu0 0.0
    %224 = vmatpush2.msra.mxu0 0.0
    %225 = vmatprep.subr.mxu0 0.0
    %226 = vmatpush2.msra.mxu0 0.0
    %227 = vmatprep.subr.mxu0 0.0
    %228 = vmatpush2.msra.mxu0 0.0
    %229 = vmatprep.subr.mxu0 0.0
    %230 = vmatpush2.msra.mxu0 0.0
    %231 = vmatprep.subr.mxu0 0.0
    %232 = vmatpush2.msra.mxu0 0.0
    %233 = vmatprep.subr.mxu0 0.0
    %234 = vmatpush2.msra.mxu0 0.0
    %235 = vmatprep.subr.mxu0 0.0
    %236 = vmatpush2.msra.mxu0 0.0
    %237 = vmatprep.subr.mxu0 0.0
    %238 = vmatpush2.msra.mxu0 0.0
    %239 = vmatprep.subr.mxu0 0.0
    %240 = vmatpush2.msra.mxu0 0.0
    %241 = vmatprep.subr.mxu0 0.0
    %242 = vmatpush2.msra.mxu0 0.0
    %243 = vmatprep.subr.mxu0 0.0
    %244 = vmatpush2.msra.mxu0 0.0
    %245 = vmatprep.subr.mxu0 0.0
    %246 = vmatpush2.msra.mxu0 0.0
    %247 = vmatprep.subr.mxu0 0.0
    %248 = vmatpush2.msra.mxu0 0.0
    %249 = vmatprep.subr.mxu0 0.0
    %250 = vmatpush2.msra.mxu0 0.0
    %251 = vmatprep.mubr.f32.mxu0 0.0
    %252 = vmatmul.mubr.f32.gmra.mxu0 %v185
    %v253 = vpop.f32.mrf.mxu0
    %v254 = vadd.f32 %v167, %v253
    %v255 = vpop.f32.mrf.mxu0
    %v256 = vadd.f32 %v171, %v255
    %257 = vdwg.mxu0
    %258 = vmatprep.subr.mxu0 0.0
    %259 = vmatpush1.msra.mxu0 0.0
    %260 = vmatprep.subr.mxu0 0.0
    %261 = vmatpush1.msra.mxu0 0.0
    %262 = vmatprep.subr.mxu0 0.0
    %263 = vmatpush1.msra.mxu0 0.0
    %264 = vmatprep.subr.mxu0 0.0
    %265 = vmatpush1.msra.mxu0 0.0
    %266 = vmatprep.subr.mxu0 0.0
    %267 = vmatpush1.msra.mxu0 0.0
    %268 = vmatprep.subr.mxu0 0.0
    %269 = vmatpush1.msra.mxu0 0.0
    %270 = vmatprep.subr.mxu0 0.0
    %271 = vmatpush1.msra.mxu0 0.0
    %272 = vmatprep.subr.mxu0 0.0
    %273 = vmatpush1.msra.mxu0 0.0
    %274 = vmatprep.subr.mxu0 0.0
    %275 = vmatpush1.msra.mxu0 0.0
    %276 = vmatprep.subr.mxu0 0.0
    %277 = vmatpush1.msra.mxu0 0.0
    %278 = vmatprep.subr.mxu0 0.0
    %279 = vmatpush1.msra.mxu0 0.0
    %280 = vmatprep.subr.mxu0 0.0
    %281 = vmatpush1.msra.mxu0 0.0
    %282 = vmatprep.subr.mxu0 %v161
    %283 = vmatpush1.msra.mxu0 %v160
    %284 = vmatprep.subr.mxu0 %v157
    %285 = vmatpush1.msra.mxu0 %v156
    %286 = vmatprep.subr.mxu0 %v153
    %287 = vmatpush1.msra.mxu0 %v152
    %288 = vmatprep.subr.mxu0 %v149
    %289 = vmatpush1.msra.mxu0 %v148
    %290 = vmatprep.subr.mxu0 0.0
    %291 = vmatpush2.msra.mxu0 0.0
    %292 = vmatprep.subr.mxu0 0.0
    %293 = vmatpush2.msra.mxu0 0.0
    %294 = vmatprep.subr.mxu0 0.0
    %295 = vmatpush2.msra.mxu0 0.0
    %296 = vmatprep.subr.mxu0 0.0
    %297 = vmatpush2.msra.mxu0 0.0
    %298 = vmatprep.subr.mxu0 0.0
    %299 = vmatpush2.msra.mxu0 0.0
    %300 = vmatprep.subr.mxu0 0.0
    %301 = vmatpush2.msra.mxu0 0.0
    %302 = vmatprep.subr.mxu0 0.0
    %303 = vmatpush2.msra.mxu0 0.0
    %304 = vmatprep.subr.mxu0 0.0
    %305 = vmatpush2.msra.mxu0 0.0
    %306 = vmatprep.subr.mxu0 0.0
    %307 = vmatpush2.msra.mxu0 0.0
    %308 = vmatprep.subr.mxu0 0.0
    %309 = vmatpush2.msra.mxu0 0.0
    %310 = vmatprep.subr.mxu0 0.0
    %311 = vmatpush2.msra.mxu0 0.0
    %312 = vmatprep.subr.mxu0 0.0
    %313 = vmatpush2.msra.mxu0 0.0
    %314 = vmatprep.subr.mxu0 0.0
    %315 = vmatpush2.msra.mxu0 0.0
    %316 = vmatprep.subr.mxu0 0.0
    %317 = vmatpush2.msra.mxu0 0.0
    %318 = vmatprep.subr.mxu0 0.0
    %319 = vmatpush2.msra.mxu0 0.0
    %320 = vmatprep.subr.mxu0 0.0
    %321 = vmatpush2.msra.mxu0 0.0
    %322 = vmatprep.mubr.f32.mxu0 0.0
    %323 = vmatmul.mubr.f32.gmra.mxu0 %v185
    %v324 = vpop.f32.mrf.mxu0
    %v325 = vadd.f32 %v175, %v324
    %v326 = vpop.f32.mrf.mxu0
    %v327 = vadd.f32 %v179, %v326
    %328 = vdwg.mxu0
    %v329 = vsub.f32 0.0, %v325
    %v330 = vmul.f32 %v329, 1.442695
    %v331 = vpow.pop %v330
    %v332 = vadd.f32 %v331, 1.0
    %v333 = vrcp.pop %v332
    %v334 = vmul.f32 1.0, %v333
    %v335 = vmul.f32 %v256, %v334
    %336 = vst [vmem:[%s7] sm:$0x1] %v254
    %337 = vst [vmem:[%s8] sm:$0x1] %v335
    %vm338 = vcmask 516096
    %339 = vst.msk [vmem:[#allocation8] sm:$0x1] %vm338, %v327
    // Predicated region
    $region38: #{hypernetwork_pallas.1} parent=1 // pred_check
      _
    $region39: #{hypernetwork_pallas.1} parent=1 // pred_check_branch
      %341 = sbr.rel (0) target = $region41
    $region40: #{hypernetwork_pallas.1} parent=1 // pred_region
      _
    $region41: #{hypernetwork_pallas.1} parent=1 // pred_fallthru
      _
    // Predicated region
    $region42: #{hypernetwork_pallas.1} parent=1 // pred_check
      _
    $region43: #{hypernetwork_pallas.1} parent=1 // pred_check_branch
      %343 = sbr.rel (0) target = $region45
    $region44: #{hypernetwork_pallas.1} parent=1 // pred_region
      _
    $region45: #{hypernetwork_pallas.1} parent=1 // pred_fallthru
      _
    // Predicated region
    $region46: #{hypernetwork_pallas.1} parent=1 // pred_check
      _
    $region47: #{hypernetwork_pallas.1} parent=1 // pred_check_branch
      %345 = sbr.rel (0) target = $region49
    $region48: #{hypernetwork_pallas.1} parent=1 // pred_region
      %s347 = ssub.s32 16, 16
      %348 = vsyncadd [#allocation5], %s347
      %s350 = sshll.u32 [#allocation8], 4
      %s351 = int_to_ptr.vmem [resolvable:$true] %s350
      %353 = dma.vmem_to_hbm [thread:$0]  %s351, 16, %s9, [#allocation5]
    $region49: #{hypernetwork_pallas.1} parent=1 // pred_fallthru
      _
    // Predicated region
    $region50: #{hypernetwork_pallas.1} parent=1 // pred_check
      _
    $region51: #{hypernetwork_pallas.1} parent=1 // pred_check_branch
      %355 = sbr.rel (0) target = $region53
    $region52: #{hypernetwork_pallas.1} parent=1 // pred_region
      _
    $region53: #{hypernetwork_pallas.1} parent=1 // pred_fallthru
      _
    // Predicated region
    $region54: #{hypernetwork_pallas.1} parent=1 // pred_check
      _
    $region55: #{hypernetwork_pallas.1} parent=1 // pred_check_branch
      %357 = sbr.rel (0) target = $region57
    $region56: #{hypernetwork_pallas.1} parent=1 // pred_region
      _
    $region57: #{hypernetwork_pallas.1} parent=1 // pred_fallthru
      _
    // Predicated region
    $region58: #{hypernetwork_pallas.1} parent=1 // pred_check
      _
    $region59: #{hypernetwork_pallas.1} parent=1 // pred_check_branch
      %359 = sbr.rel (0) target = $region61
    $region60: #{hypernetwork_pallas.1} parent=1 // pred_region
      %360 = dma.done [#allocation5], 16
    $region61: #{hypernetwork_pallas.1} parent=1 // pred_fallthru
      _
    %361 = vsyncpa [#allocation4], 1
    %362 = vsyncpa [#allocation7], 1
    %363 = vsyncpa [#allocation5], 1

</llo_original>
